<compile_context>
chip_gen: v7x
topology: tpu7x:2x2x1
jax: 0.10.0
libtpu: 0.0.40
codegen_flags: <defaults>
</compile_context>

<pallas_src>
import math

import jax
import jax.numpy as jnp
from jax.experimental import pallas as pl
from jax.experimental.pallas import tpu as pltpu

LOG_SIG_MAX = 2.0
LOG_SIG_MIN = -20.0

# Constant std implied by the reference forward: std = exp(log_std)*0 + (2*pi)^-0.5
_STD = (2.0 * math.pi) ** (-0.5)
# log_prob = -(x-mean)^2 / (2*std^2) - log(std) - 0.5*log(2*pi)  ==  C1*(x-mean)^2 + C0
_C1 = -1.0 / (2.0 * _STD * _STD)                      # = -pi
_C0 = -math.log(_STD) - 0.5 * math.log(2.0 * math.pi)  # = 0.0


def _predictor_kernel(ctx_ref, state_ref,
                      w1c_ref, w1s_ref, b1_ref,
                      w2_ref, b2_ref,
                      wm_ref, bm_ref,
                      out_ref):
    # One batch tile per grid step; all weights resident in VMEM.
    ctx = ctx_ref[...]
    state = state_ref[...]

    # layer 1: ctx @ W1_ctx + state @ W1_state + b1  (== concat([ctx,state]) @ W1 + b1)
    h = (jnp.dot(ctx, w1c_ref[...], preferred_element_type=jnp.float32)
         + jnp.dot(state, w1s_ref[...], preferred_element_type=jnp.float32)
         + b1_ref[...])
    h = jnp.maximum(h, 0.0)

    # layer 2
    h = jnp.dot(h, w2_ref[...], preferred_element_type=jnp.float32) + b2_ref[...]
    h = jnp.maximum(h, 0.0)

    # mean head (log_std head is mathematically dead -> removed)
    mean = jnp.dot(h, wm_ref[...], preferred_element_type=jnp.float32) + bm_ref[...]

    # constant-std Gaussian log-prob, folded constants (VPU-only epilogue)
    diff = state - mean
    out_ref[...] = _C1 * (diff * diff) + _C0


def predictor_forward(context, state, next_state, params, disc_obs_index=None):
    """Pure-JAX wrapper around the Pallas kernel."""
    del next_state  # accepted but unused by the reference forward
    if disc_obs_index is not None:
        state = state[:, jnp.asarray(disc_obs_index)]

    context = context.astype(jnp.float32)
    state = state.astype(jnp.float32)

    w1, b1, w2, b2, wm, bm, ws, bs = params
    del ws, bs  # dead branch: std is constant in the reference forward

    num_inputs = context.shape[1]
    num_outputs = state.shape[1]
    hidden_dim = w1.shape[1]
    batch = context.shape[0]

    # Pre-split W1 once (avoids materializing xu=concat([context,state]) in HBM).
    w1c = w1[:num_inputs, :]
    w1s = w1[num_inputs:, :]

    # Batch tiling: whole batch if small, else 512-row tiles (multiple of 8 sublanes).
    tile_b = batch if batch <= 512 else 512
    grid = (pl.cdiv(batch, tile_b),)

    act_spec = lambda cols: pl.BlockSpec((tile_b, cols), lambda i: (i, 0))
    w_spec = lambda r, c: pl.BlockSpec((r, c), lambda i: (0, 0))  # resident weights

    out = pl.pallas_call(
        _predictor_kernel,
        out_shape=jax.ShapeDtypeStruct((batch, num_outputs), jnp.float32),
        grid=grid,
        in_specs=[
            act_spec(num_inputs),                 # context
            act_spec(num_outputs),                # state
            w_spec(num_inputs, hidden_dim),       # W1_ctx
            w_spec(num_outputs, hidden_dim),      # W1_state
            w_spec(1, hidden_dim),                # b1
            w_spec(hidden_dim, hidden_dim),       # W2
            w_spec(1, hidden_dim),                # b2
            w_spec(hidden_dim, num_outputs),      # Wm
            w_spec(1, num_outputs),               # bm
        ],
        out_specs=act_spec(num_outputs),
        compiler_params=pltpu.CompilerParams(
            dimension_semantics=("parallel",)),   # shards across TCs on v7x
    )(context, state, w1c, w1s, b1, w2, b2, wm, bm)
    return out


def _xavier_uniform(key, fan_in, fan_out):
    bound = math.sqrt(6.0 / (fan_in + fan_out))
    # stored as [in, out] so kernel computes x @ W
    return jax.random.uniform(key, (fan_in, fan_out), jnp.float32, -bound, bound)


def init_predictor_params(key, num_inputs, num_outputs, hidden_dim):
    k1, k2, k3, k4 = jax.random.split(key, 4)
    w1 = _xavier_uniform(k1, num_inputs + num_outputs, hidden_dim)
    b1 = jnp.zeros((1, hidden_dim), jnp.float32)
    w2 = _xavier_uniform(k2, hidden_dim, hidden_dim)
    b2 = jnp.zeros((1, hidden_dim), jnp.float32)
    wm = _xavier_uniform(k3, hidden_dim, num_outputs)
    bm = jnp.zeros((1, num_outputs), jnp.float32)
    ws = _xavier_uniform(k4, hidden_dim, num_outputs)   # kept for parameter parity
    bs = jnp.zeros((1, num_outputs), jnp.float32)       # (dead in the forward)
    return (w1, b1, w2, b2, wm, bm, ws, bs)


if __name__ == "__main__":
    # small shapes consistent with the module
    batch, num_inputs, num_outputs, hidden_dim = 8, 16, 8, 32

    key = jax.random.PRNGKey(0)
    k_ctx, k_state, k_next, k_params = jax.random.split(key, 4)

    context = jax.random.normal(k_ctx, (batch, num_inputs), jnp.float32)
    state = jax.random.normal(k_state, (batch, num_outputs), jnp.float32)
    next_state = jax.random.normal(k_next, (batch, num_outputs), jnp.float32)

    params = init_predictor_params(k_params, num_inputs, num_outputs, hidden_dim)

    log_prob = predictor_forward(context, state, next_state, params)
    jax.block_until_ready(log_prob)

    # reference check in plain JAX — includes the (dead) log_std branch to prove
    # the simplified kernel is output-identical to the PyTorch forward.
    xu = jnp.concatenate([context, state], axis=1)
    w1, b1, w2, b2, wm, bm, ws, bs = params
    h = jnp.maximum(xu @ w1 + b1, 0.0)
    h = jnp.maximum(h @ w2 + b2, 0.0)
    mean = h @ wm + bm
    log_std = jnp.clip(h @ ws + bs, LOG_SIG_MIN, LOG_SIG_MAX)
    std = jnp.exp(log_std) * 0.0 + (2.0 * math.pi) ** (-0.5)
    ref = (-((state - mean) ** 2) / (2.0 * std * std)
           - jnp.log(std) - 0.5 * math.log(2.0 * math.pi))
    assert jnp.allclose(log_prob, ref, atol=1e-4, rtol=1e-4)

    print("KERNEL_OK")
</pallas_src>

<mosaic_0001>
module attributes {stable_mosaic.version = 11 : i64} {
  func.func @_predictor_kernel(%arg0: i32, %arg1: memref<8x16xf32, #tpu.memory_space<vmem>>, %arg2: memref<8x8xf32, #tpu.memory_space<vmem>>, %arg3: memref<16x32xf32, #tpu.memory_space<vmem>>, %arg4: memref<8x32xf32, #tpu.memory_space<vmem>>, %arg5: memref<1x32xf32, #tpu.memory_space<vmem>>, %arg6: memref<32x32xf32, #tpu.memory_space<vmem>>, %arg7: memref<1x32xf32, #tpu.memory_space<vmem>>, %arg8: memref<32x8xf32, #tpu.memory_space<vmem>>, %arg9: memref<1x8xf32, #tpu.memory_space<vmem>>, %arg10: memref<8x8xf32, #tpu.memory_space<vmem>>) attributes {dimension_semantics = [#tpu.dimension_semantics<parallel>], iteration_bounds = array<i64: 1>, scalar_prefetch = 0 : i64, scratch_operands = 0 : i64, tpu.core_type = #tpu.core_type<tc>, window_params = [{transform_indices = @transform_0, window_bounds = array<i64: 8, 16>}, {transform_indices = @transform_1, window_bounds = array<i64: 8, 8>}, {pipeline_mode = #tpu.pipeline_mode<synchronous>, transform_indices = @transform_2, window_bounds = array<i64: 16, 32>}, {pipeline_mode = #tpu.pipeline_mode<synchronous>, transform_indices = @transform_3, window_bounds = array<i64: 8, 32>}, {pipeline_mode = #tpu.pipeline_mode<synchronous>, transform_indices = @transform_4, window_bounds = array<i64: 1, 32>}, {pipeline_mode = #tpu.pipeline_mode<synchronous>, transform_indices = @transform_5, window_bounds = array<i64: 32, 32>}, {pipeline_mode = #tpu.pipeline_mode<synchronous>, transform_indices = @transform_6, window_bounds = array<i64: 1, 32>}, {pipeline_mode = #tpu.pipeline_mode<synchronous>, transform_indices = @transform_7, window_bounds = array<i64: 32, 8>}, {pipeline_mode = #tpu.pipeline_mode<synchronous>, transform_indices = @transform_8, window_bounds = array<i64: 1, 8>}, {transform_indices = @transform_9, window_bounds = array<i64: 8, 8>}]} {
    %c0 = arith.constant 0 : index
    %c0_0 = arith.constant 0 : index
    %0 = vector.load %arg1[%c0, %c0_0] : memref<8x16xf32, #tpu.memory_space<vmem>>, vector<8x16xf32>
    %c0_1 = arith.constant 0 : index
    %c0_2 = arith.constant 0 : index
    %1 = vector.load %arg2[%c0_1, %c0_2] : memref<8x8xf32, #tpu.memory_space<vmem>>, vector<8x8xf32>
    %c0_3 = arith.constant 0 : index
    %c0_4 = arith.constant 0 : index
    %2 = vector.load %arg3[%c0_3, %c0_4] : memref<16x32xf32, #tpu.memory_space<vmem>>, vector<16x32xf32>
    %cst = arith.constant dense<0.000000e+00> : vector<8x32xf32>
    %3 = tpu.matmul %0, %2, %cst {dimension_numbers = #tpu.dot_dimension_numbers<[1], [0], [0], [1], [0, 0, 1, 1], [], []>} : vector<8x16xf32>, vector<16x32xf32>, vector<8x32xf32> -> vector<8x32xf32>
    %c0_5 = arith.constant 0 : index
    %c0_6 = arith.constant 0 : index
    %4 = vector.load %arg4[%c0_5, %c0_6] : memref<8x32xf32, #tpu.memory_space<vmem>>, vector<8x32xf32>
    %cst_7 = arith.constant dense<0.000000e+00> : vector<8x32xf32>
    %5 = tpu.matmul %1, %4, %cst_7 {dimension_numbers = #tpu.dot_dimension_numbers<[1], [0], [0], [1], [0, 0, 1, 1], [], []>} : vector<8x8xf32>, vector<8x32xf32>, vector<8x32xf32> -> vector<8x32xf32>
    %6 = arith.addf %3, %5 : vector<8x32xf32>
    %c0_8 = arith.constant 0 : index
    %c0_9 = arith.constant 0 : index
    %7 = vector.load %arg5[%c0_8, %c0_9] : memref<1x32xf32, #tpu.memory_space<vmem>>, vector<1x32xf32>
    %8 = vector.broadcast %7 : vector<1x32xf32> to vector<8x32xf32>
    %9 = arith.addf %6, %8 : vector<8x32xf32>
    %cst_10 = arith.constant 0.000000e+00 : f32
    %10 = vector.broadcast %cst_10 : f32 to vector<8x32xf32>
    %11 = arith.maximumf %9, %10 : vector<8x32xf32>
    %c0_11 = arith.constant 0 : index
    %c0_12 = arith.constant 0 : index
    %12 = vector.load %arg6[%c0_11, %c0_12] : memref<32x32xf32, #tpu.memory_space<vmem>>, vector<32x32xf32>
    %cst_13 = arith.constant dense<0.000000e+00> : vector<8x32xf32>
    %13 = tpu.matmul %11, %12, %cst_13 {dimension_numbers = #tpu.dot_dimension_numbers<[1], [0], [0], [1], [0, 0, 1, 1], [], []>} : vector<8x32xf32>, vector<32x32xf32>, vector<8x32xf32> -> vector<8x32xf32>
    %c0_14 = arith.constant 0 : index
    %c0_15 = arith.constant 0 : index
    %14 = vector.load %arg7[%c0_14, %c0_15] : memref<1x32xf32, #tpu.memory_space<vmem>>, vector<1x32xf32>
    %15 = vector.broadcast %14 : vector<1x32xf32> to vector<8x32xf32>
    %16 = arith.addf %13, %15 : vector<8x32xf32>
    %cst_16 = arith.constant 0.000000e+00 : f32
    %17 = vector.broadcast %cst_16 : f32 to vector<8x32xf32>
    %18 = arith.maximumf %16, %17 : vector<8x32xf32>
    %c0_17 = arith.constant 0 : index
    %c0_18 = arith.constant 0 : index
    %19 = vector.load %arg8[%c0_17, %c0_18] : memref<32x8xf32, #tpu.memory_space<vmem>>, vector<32x8xf32>
    %cst_19 = arith.constant dense<0.000000e+00> : vector<8x8xf32>
    %20 = tpu.matmul %18, %19, %cst_19 {dimension_numbers = #tpu.dot_dimension_numbers<[1], [0], [0], [1], [0, 0, 1, 1], [], []>} : vector<8x32xf32>, vector<32x8xf32>, vector<8x8xf32> -> vector<8x8xf32>
    %c0_20 = arith.constant 0 : index
    %c0_21 = arith.constant 0 : index
    %21 = vector.load %arg9[%c0_20, %c0_21] : memref<1x8xf32, #tpu.memory_space<vmem>>, vector<1x8xf32>
    %22 = vector.broadcast %21 : vector<1x8xf32> to vector<8x8xf32>
    %23 = arith.addf %20, %22 : vector<8x8xf32>
    %24 = arith.subf %1, %23 : vector<8x8xf32>
    %25 = arith.mulf %24, %24 : vector<8x8xf32>
    %cst_22 = arith.constant -3.14159274 : f32
    %26 = vector.broadcast %cst_22 : f32 to vector<8x8xf32>
    %27 = arith.mulf %26, %25 : vector<8x8xf32>
    %cst_23 = arith.constant 0.000000e+00 : f32
    %28 = vector.broadcast %cst_23 : f32 to vector<8x8xf32>
    %29 = arith.addf %27, %28 : vector<8x8xf32>
    %c0_24 = arith.constant 0 : index
    %c0_25 = arith.constant 0 : index
    %30 = vector.load %arg10[%c0_24, %c0_25] : memref<8x8xf32, #tpu.memory_space<vmem>>, vector<8x8xf32>
    tpu.vector_store %arg10[%c0_24, %c0_25], %29 {strides = array<i32>} : memref<8x8xf32, #tpu.memory_space<vmem>>, vector<8x8xf32>,
    return
  }
  func.func @transform_0(%arg0: i32) -> (i32, i32) {
    %c0_i32 = arith.constant 0 : i32
    %c0_i32_0 = arith.constant 0 : i32
    return %arg0, %c0_i32 : i32, i32
  }
  func.func @transform_1(%arg0: i32) -> (i32, i32) {
    %c0_i32 = arith.constant 0 : i32
    %c0_i32_0 = arith.constant 0 : i32
    return %arg0, %c0_i32 : i32, i32
  }
  func.func @transform_2(%arg0: i32) -> (i32, i32) {
    %c0_i32 = arith.constant 0 : i32
    %c0_i32_0 = arith.constant 0 : i32
    %c0_i32_1 = arith.constant 0 : i32
    return %c0_i32, %c0_i32_0 : i32, i32
  }
  func.func @transform_3(%arg0: i32) -> (i32, i32) {
    %c0_i32 = arith.constant 0 : i32
    %c0_i32_0 = arith.constant 0 : i32
    %c0_i32_1 = arith.constant 0 : i32
    return %c0_i32, %c0_i32_0 : i32, i32
  }
  func.func @transform_4(%arg0: i32) -> (i32, i32) {
    %c0_i32 = arith.constant 0 : i32
    %c0_i32_0 = arith.constant 0 : i32
    %c0_i32_1 = arith.constant 0 : i32
    return %c0_i32, %c0_i32_0 : i32, i32
  }
  func.func @transform_5(%arg0: i32) -> (i32, i32) {
    %c0_i32 = arith.constant 0 : i32
    %c0_i32_0 = arith.constant 0 : i32
    %c0_i32_1 = arith.constant 0 : i32
    return %c0_i32, %c0_i32_0 : i32, i32
  }
  func.func @transform_6(%arg0: i32) -> (i32, i32) {
    %c0_i32 = arith.constant 0 : i32
    %c0_i32_0 = arith.constant 0 : i32
    %c0_i32_1 = arith.constant 0 : i32
    return %c0_i32, %c0_i32_0 : i32, i32
  }
  func.func @transform_7(%arg0: i32) -> (i32, i32) {
    %c0_i32 = arith.constant 0 : i32
    %c0_i32_0 = arith.constant 0 : i32
    %c0_i32_1 = arith.constant 0 : i32
    return %c0_i32, %c0_i32_0 : i32, i32
  }
  func.func @transform_8(%arg0: i32) -> (i32, i32) {
    %c0_i32 = arith.constant 0 : i32
    %c0_i32_0 = arith.constant 0 : i32
    %c0_i32_1 = arith.constant 0 : i32
    return %c0_i32, %c0_i32_0 : i32, i32
  }
  func.func @transform_9(%arg0: i32) -> (i32, i32) {
    %c0_i32 = arith.constant 0 : i32
    %c0_i32_0 = arith.constant 0 : i32
    return %arg0, %c0_i32 : i32, i32
  }
}

</mosaic_0001>

<llo_original>
// kernel: tpu_custom_call.1
$region0: #{tpu_custom_call.1}
  #allocation0 [shape = 'u32[]', space=smem, size = 0x4, offset = 0x4, fixed_abs, tag = 'smem constant byte address 0x4 - core index']
  #allocation1 [shape = 'u32[144,128]{1,0:T(1,128)}', space=vmem, size = 0x12000, scoped, tag = 'internal scratch']
  %s0 = inlined_call_operand.vmem [shape: f32[8,16], index: 0, kind: input, shape index: {}]
  %s1 = inlined_call_operand.hbm [shape: f32[8,8], index: 1, kind: input, shape index: {}]
  %s2 = inlined_call_operand.vmem [shape: f32[16,32], index: 2, kind: input, shape index: {}]
  %s3 = inlined_call_operand.hbm [shape: f32[8,32], index: 3, kind: input, shape index: {}]
  %s4 = inlined_call_operand.vmem [shape: f32[1,32], index: 4, kind: input, shape index: {}]
  %s5 = inlined_call_operand.vmem [shape: f32[32,32], index: 5, kind: input, shape index: {}]
  %s6 = inlined_call_operand.vmem [shape: f32[1,32], index: 6, kind: input, shape index: {}]
  %s7 = inlined_call_operand.vmem [shape: f32[32,8], index: 7, kind: input, shape index: {}]
  %s8 = inlined_call_operand.vmem [shape: f32[1,8], index: 8, kind: input, shape index: {}]
  %s9 = inlined_call_operand.hbm [shape: f32[8,8], index: 9, kind: output, shape index: {}]
  %s10 = sld [smem:[#allocation0]]
  $region54: #{tpu_custom_call.1} parent=0
    _
  %s12 = ssub.s32 1, %s10
  %s13 = scalar_select 0, %s12, %s10
  $region1: #{tpu_custom_call.1} parent=0
    #allocation2 [shape = 'u8[4096]{0}', space=vmem, size = 0x1000, scoped, tag = 'input window, operand 1, single buffered']
    #allocation3 [shape = 's32[1]{0}', space=sflag, size = 0x4, scoped, tag = 'scoped memory for tpu_custom_call.1']
    #allocation4 [shape = 's32[1]{0}', space=sflag, size = 0x4, scoped, tag = 'scoped memory for tpu_custom_call.1']
    #allocation5 [shape = 'u8[4096]{0}', space=vmem, size = 0x1000, scoped, tag = 'input window, operand 3, single buffered']
    #allocation6 [shape = 's32[1]{0}', space=sflag, size = 0x4, scoped, tag = 'scoped memory for tpu_custom_call.1']
    #allocation7 [shape = 'u8[4096]{0}', space=vmem, size = 0x1000, scoped, tag = 'output window, operand 0, single buffered']
    %14 = vsyncpa [#allocation3], 0
    %15 = vsyncpa [#allocation6], 0
    %16 = vsyncpa [#allocation4], 0
    // Predicated region
    $region2: #{tpu_custom_call.1} parent=1 // pred_check
      _
    $region3: #{tpu_custom_call.1} parent=1 // pred_check_branch
      %18 = sbr.rel (0) target = $region5
    $region4: #{tpu_custom_call.1} parent=1 // pred_region
      _
    $region5: #{tpu_custom_call.1} parent=1 // pred_fallthru
      _
    // Predicated region
    $region6: #{tpu_custom_call.1} parent=1 // pred_check
      _
    $region7: #{tpu_custom_call.1} parent=1 // pred_check_branch
      %20 = sbr.rel (0) target = $region9
    $region8: #{tpu_custom_call.1} parent=1 // pred_region
      %s22 = ssub.s32 128, 128
      %23 = vsyncadd [#allocation3], %s22
      %s25 = sshll.u32 [#allocation2], 4
      %s26 = int_to_ptr.vmem [resolvable:$true] %s25
      %28 = dma.hbm_to_vmem [thread:$0]  %s1, 128, %s26, [#allocation3]
    $region9: #{tpu_custom_call.1} parent=1 // pred_fallthru
      _
    // Predicated region
    $region10: #{tpu_custom_call.1} parent=1 // pred_check
      _
    $region11: #{tpu_custom_call.1} parent=1 // pred_check_branch
      %30 = sbr.rel (0) target = $region13
    $region12: #{tpu_custom_call.1} parent=1 // pred_region
      _
    $region13: #{tpu_custom_call.1} parent=1 // pred_fallthru
      _
    // Predicated region
    $region14: #{tpu_custom_call.1} parent=1 // pred_check
      _
    $region15: #{tpu_custom_call.1} parent=1 // pred_check_branch
      %32 = sbr.rel (0) target = $region17
    $region16: #{tpu_custom_call.1} parent=1 // pred_region
      %s34 = ssub.s32 128, 128
      %35 = vsyncadd [#allocation6], %s34
      %s37 = sshll.u32 [#allocation5], 4
      %s38 = int_to_ptr.vmem [resolvable:$true] %s37
      %40 = dma.hbm_to_vmem [thread:$0]  %s3, 128, %s38, [#allocation6]
    $region17: #{tpu_custom_call.1} parent=1 // pred_fallthru
      _
    // Predicated region
    $region18: #{tpu_custom_call.1} parent=1 // pred_check
      _
    $region19: #{tpu_custom_call.1} parent=1 // pred_check_branch
      %42 = sbr.rel (0) target = $region21
    $region20: #{tpu_custom_call.1} parent=1 // pred_region
      _
    $region21: #{tpu_custom_call.1} parent=1 // pred_fallthru
      _
    // Predicated region
    $region22: #{tpu_custom_call.1} parent=1 // pred_check
      _
    $region23: #{tpu_custom_call.1} parent=1 // pred_check_branch
      %44 = sbr.rel (0) target = $region25
    $region24: #{tpu_custom_call.1} parent=1 // pred_region
      _
    $region25: #{tpu_custom_call.1} parent=1 // pred_fallthru
      _
    // Predicated region
    $region26: #{tpu_custom_call.1} parent=1 // pred_check
      _
    $region27: #{tpu_custom_call.1} parent=1 // pred_check_branch
      %46 = sbr.rel (0) target = $region29
    $region28: #{tpu_custom_call.1} parent=1 // pred_region
      _
    $region29: #{tpu_custom_call.1} parent=1 // pred_fallthru
      _
    // Predicated region
    $region30: #{tpu_custom_call.1} parent=1 // pred_check
      _
    $region31: #{tpu_custom_call.1} parent=1 // pred_check_branch
      %48 = sbr.rel (0) target = $region33
    $region32: #{tpu_custom_call.1} parent=1 // pred_region
      _
    $region33: #{tpu_custom_call.1} parent=1 // pred_fallthru
      _
    // Predicated region
    $region34: #{tpu_custom_call.1} parent=1 // pred_check
      _
    $region35: #{tpu_custom_call.1} parent=1 // pred_check_branch
      %50 = sbr.rel (0) target = $region37
    $region36: #{tpu_custom_call.1} parent=1 // pred_region
      _
    $region37: #{tpu_custom_call.1} parent=1 // pred_fallthru
      _
    // Predicated region
    $region38: #{tpu_custom_call.1} parent=1 // pred_check
      _
    $region39: #{tpu_custom_call.1} parent=1 // pred_check_branch
      %52 = sbr.rel (0) target = $region41
    $region40: #{tpu_custom_call.1} parent=1 // pred_region
      %53 = dma.done [#allocation3], 128
    $region41: #{tpu_custom_call.1} parent=1 // pred_fallthru
      _
    // Predicated region
    $region42: #{tpu_custom_call.1} parent=1 // pred_check
      _
    $region43: #{tpu_custom_call.1} parent=1 // pred_check_branch
      %55 = sbr.rel (0) target = $region45
    $region44: #{tpu_custom_call.1} parent=1 // pred_region
      %56 = dma.done [#allocation6], 128
    $region45: #{tpu_custom_call.1} parent=1 // pred_fallthru
      _
    %v57 = vld [vmem:[%s0] sm:$0xff]
    %v58 = vld [vmem:[#allocation2] sm:$0xff]
    %v59 = vld [vmem:[%s2] sm:$0xff]
    %v60 = vld [vmem:[%s2 + $0x8] sm:$0xff]
    %v61 = vld [vmem:[#allocation5] sm:$0xff]
    %vm62 = vcmask 64512
    %v64 = vsel %vm62, %v58, 0
    %66 = vmatprep.subr.mxu0 0.0
    %67 = vmatpush1.msra.mxu0 %v61
    %68 = vmatprep.subr.mxu0 0.0
    %69 = vmatpush1.msra.mxu0 0.0
    %70 = vmatprep.subr.mxu0 0.0
    %71 = vmatpush1.msra.mxu0 0.0
    %72 = vmatprep.subr.mxu0 0.0
    %73 = vmatpush1.msra.mxu0 0.0
    %74 = vmatprep.subr.mxu0 0.0
    %75 = vmatpush1.msra.mxu0 0.0
    %76 = vmatprep.subr.mxu0 0.0
    %77 = vmatpush1.msra.mxu0 0.0
    %78 = vmatprep.subr.mxu0 0.0
    %79 = vmatpush1.msra.mxu0 0.0
    %80 = vmatprep.subr.mxu0 0.0
    %81 = vmatpush1.msra.mxu0 0.0
    %82 = vmatprep.subr.mxu0 0.0
    %83 = vmatpush1.msra.mxu0 0.0
    %84 = vmatprep.subr.mxu0 0.0
    %85 = vmatpush1.msra.mxu0 0.0
    %86 = vmatprep.subr.mxu0 0.0
    %87 = vmatpush1.msra.mxu0 0.0
    %88 = vmatprep.subr.mxu0 0.0
    %89 = vmatpush1.msra.mxu0 0.0
    %90 = vmatprep.subr.mxu0 0.0
    %91 = vmatpush1.msra.mxu0 0.0
    %92 = vmatprep.subr.mxu0 0.0
    %93 = vmatpush1.msra.mxu0 0.0
    %94 = vmatprep.subr.mxu0 0.0
    %95 = vmatpush1.msra.mxu0 0.0
    %96 = vmatprep.subr.mxu0 0.0
    %97 = vmatpush1.msra.mxu0 0.0
    %98 = vmatprep.subr.mxu0 0.0
    %99 = vmatpush1.msra.mxu0 0.0
    %100 = vmatprep.subr.mxu0 0.0
    %101 = vmatpush1.msra.mxu0 0.0
    %102 = vmatprep.subr.mxu0 0.0
    %103 = vmatpush1.msra.mxu0 0.0
    %104 = vmatprep.subr.mxu0 0.0
    %105 = vmatpush1.msra.mxu0 0.0
    %106 = vmatprep.subr.mxu0 0.0
    %107 = vmatpush1.msra.mxu0 0.0
    %108 = vmatprep.subr.mxu0 0.0
    %109 = vmatpush1.msra.mxu0 0.0
    %110 = vmatprep.subr.mxu0 0.0
    %111 = vmatpush1.msra.mxu0 0.0
    %112 = vmatprep.subr.mxu0 0.0
    %113 = vmatpush1.msra.mxu0 0.0
    %114 = vmatprep.subr.mxu0 0.0
    %115 = vmatpush1.msra.mxu0 0.0
    %116 = vmatprep.subr.mxu0 0.0
    %117 = vmatpush1.msra.mxu0 0.0
    %118 = vmatprep.subr.mxu0 0.0
    %119 = vmatpush1.msra.mxu0 0.0
    %120 = vmatprep.subr.mxu0 0.0
    %121 = vmatpush1.msra.mxu0 0.0
    %122 = vmatprep.subr.mxu0 0.0
    %123 = vmatpush1.msra.mxu0 0.0
    %124 = vmatprep.subr.mxu0 0.0
    %125 = vmatpush1.msra.mxu0 0.0
    %126 = vmatprep.subr.mxu0 0.0
    %127 = vmatpush1.msra.mxu0 0.0
    %128 = vmatprep.subr.mxu0 0.0
    %129 = vmatpush1.msra.mxu0 0.0
    %130 = vmatprep.mubr.f32.mxu0 0.0
    %131 = vmatmul.mubr.f32.gmra.mrb[0].mxu0 %v64
    %v132 = vpop.f32.mrb[0].mxu0
    %v133 = vadd.f32 0.0, %v132
    %v134 = vpop.f32.mrb[0].mxu0
    %135 = vdwg.mxu0
    %vm136 = vcmask 130048
    %v138 = vsel %vm136, %v57, 0
    %140 = vmatprep.subr.mxu0 0.0
    %141 = vmatpush1.msra.mxu0 %v59
    %142 = vmatprep.subr.mxu0 0.0
    %143 = vmatpush1.msra.mxu0 %v60
    %144 = vmatprep.subr.mxu0 0.0
    %145 = vmatpush1.msra.mxu0 0.0
    %146 = vmatprep.subr.mxu0 0.0
    %147 = vmatpush1.msra.mxu0 0.0
    %148 = vmatprep.subr.mxu0 0.0
    %149 = vmatpush1.msra.mxu0 0.0
    %150 = vmatprep.subr.mxu0 0.0
    %151 = vmatpush1.msra.mxu0 0.0
    %152 = vmatprep.subr.mxu0 0.0
    %153 = vmatpush1.msra.mxu0 0.0
    %154 = vmatprep.subr.mxu0 0.0
    %155 = vmatpush1.msra.mxu0 0.0
    %156 = vmatprep.subr.mxu0 0.0
    %157 = vmatpush1.msra.mxu0 0.0
    %158 = vmatprep.subr.mxu0 0.0
    %159 = vmatpush1.msra.mxu0 0.0
    %160 = vmatprep.subr.mxu0 0.0
    %161 = vmatpush1.msra.mxu0 0.0
    %162 = vmatprep.subr.mxu0 0.0
    %163 = vmatpush1.msra.mxu0 0.0
    %164 = vmatprep.subr.mxu0 0.0
    %165 = vmatpush1.msra.mxu0 0.0
    %166 = vmatprep.subr.mxu0 0.0
    %167 = vmatpush1.msra.mxu0 0.0
    %168 = vmatprep.subr.mxu0 0.0
    %169 = vmatpush1.msra.mxu0 0.0
    %170 = vmatprep.subr.mxu0 0.0
    %171 = vmatpush1.msra.mxu0 0.0
    %172 = vmatprep.subr.mxu0 0.0
    %173 = vmatpush1.msra.mxu0 0.0
    %174 = vmatprep.subr.mxu0 0.0
    %175 = vmatpush1.msra.mxu0 0.0
    %176 = vmatprep.subr.mxu0 0.0
    %177 = vmatpush1.msra.mxu0 0.0
    %178 = vmatprep.subr.mxu0 0.0
    %179 = vmatpush1.msra.mxu0 0.0
    %180 = vmatprep.subr.mxu0 0.0
    %181 = vmatpush1.msra.mxu0 0.0
    %182 = vmatprep.subr.mxu0 0.0
    %183 = vmatpush1.msra.mxu0 0.0
    %184 = vmatprep.subr.mxu0 0.0
    %185 = vmatpush1.msra.mxu0 0.0
    %186 = vmatprep.subr.mxu0 0.0
    %187 = vmatpush1.msra.mxu0 0.0
    %188 = vmatprep.subr.mxu0 0.0
    %189 = vmatpush1.msra.mxu0 0.0
    %190 = vmatprep.subr.mxu0 0.0
    %191 = vmatpush1.msra.mxu0 0.0
    %192 = vmatprep.subr.mxu0 0.0
    %193 = vmatpush1.msra.mxu0 0.0
    %194 = vmatprep.subr.mxu0 0.0
    %195 = vmatpush1.msra.mxu0 0.0
    %196 = vmatprep.subr.mxu0 0.0
    %197 = vmatpush1.msra.mxu0 0.0
    %198 = vmatprep.subr.mxu0 0.0
    %199 = vmatpush1.msra.mxu0 0.0
    %200 = vmatprep.subr.mxu0 0.0
    %201 = vmatpush1.msra.mxu0 0.0
    %202 = vmatprep.subr.mxu0 0.0
    %203 = vmatpush1.msra.mxu0 0.0
    %204 = vmatprep.mubr.f32.mxu0 0.0
    %205 = vmatmul.mubr.f32.gmra.mrb[0].mxu0 %v138
    %v206 = vpop.f32.mrb[0].mxu0
    %v207 = vadd.f32 %v133, %v206
    %v208 = vpop.f32.mrb[0].mxu0
    %209 = vdwg.mxu0
    %v210 = vld [vmem:[%s4] sm:$0x1]
    %v212 = vlaneseq
    %v213 = vshrl.u32 %v212, 7
    %v214 = vsub.s32 0, %v213
    %v215 = vrot.slane %v210, %v214
    %v217 = vadd.f32 %v207, %v215
    %v218 = vmax.f32 %v217, 0.0
    %v219 = vld [vmem:[%s5] sm:$0xff]
    %v220 = vld [vmem:[%s5 + $0x8] sm:$0xff]
    %v221 = vld [vmem:[%s5 + $0x10] sm:$0xff]
    %v222 = vld [vmem:[%s5 + $0x18] sm:$0xff]
    %v223 = vld [vmem:[%s6] sm:$0x1]
    %v225 = vlaneseq
    %v226 = vshrl.u32 %v225, 7
    %v227 = vsub.s32 0, %v226
    %v228 = vrot.slane %v223, %v227
    %vm230 = vcmask 261120
    %v232 = vsel %vm230, %v218, 0
    %234 = vmatprep.subr.mxu0 0.0
    %235 = vmatpush1.msra.mxu0 %v219
    %236 = vmatprep.subr.mxu0 0.0
    %237 = vmatpush1.msra.mxu0 %v220
    %238 = vmatprep.subr.mxu0 0.0
    %239 = vmatpush1.msra.mxu0 %v221
    %240 = vmatprep.subr.mxu0 0.0
    %241 = vmatpush1.msra.mxu0 %v222
    %242 = vmatprep.subr.mxu0 0.0
    %243 = vmatpush1.msra.mxu0 0.0
    %244 = vmatprep.subr.mxu0 0.0
    %245 = vmatpush1.msra.mxu0 0.0
    %246 = vmatprep.subr.mxu0 0.0
    %247 = vmatpush1.msra.mxu0 0.0
    %248 = vmatprep.subr.mxu0 0.0
    %249 = vmatpush1.msra.mxu0 0.0
    %250 = vmatprep.subr.mxu0 0.0
    %251 = vmatpush1.msra.mxu0 0.0
    %252 = vmatprep.subr.mxu0 0.0
    %253 = vmatpush1.msra.mxu0 0.0
    %254 = vmatprep.subr.mxu0 0.0
    %255 = vmatpush1.msra.mxu0 0.0
    %256 = vmatprep.subr.mxu0 0.0
    %257 = vmatpush1.msra.mxu0 0.0
    %258 = vmatprep.subr.mxu0 0.0
    %259 = vmatpush1.msra.mxu0 0.0
    %260 = vmatprep.subr.mxu0 0.0
    %261 = vmatpush1.msra.mxu0 0.0
    %262 = vmatprep.subr.mxu0 0.0
    %263 = vmatpush1.msra.mxu0 0.0
    %264 = vmatprep.subr.mxu0 0.0
    %265 = vmatpush1.msra.mxu0 0.0
    %266 = vmatprep.subr.mxu0 0.0
    %267 = vmatpush1.msra.mxu0 0.0
    %268 = vmatprep.subr.mxu0 0.0
    %269 = vmatpush1.msra.mxu0 0.0
    %270 = vmatprep.subr.mxu0 0.0
    %271 = vmatpush1.msra.mxu0 0.0
    %272 = vmatprep.subr.mxu0 0.0
    %273 = vmatpush1.msra.mxu0 0.0
    %274 = vmatprep.subr.mxu0 0.0
    %275 = vmatpush1.msra.mxu0 0.0
    %276 = vmatprep.subr.mxu0 0.0
    %277 = vmatpush1.msra.mxu0 0.0
    %278 = vmatprep.subr.mxu0 0.0
    %279 = vmatpush1.msra.mxu0 0.0
    %280 = vmatprep.subr.mxu0 0.0
    %281 = vmatpush1.msra.mxu0 0.0
    %282 = vmatprep.subr.mxu0 0.0
    %283 = vmatpush1.msra.mxu0 0.0
    %284 = vmatprep.subr.mxu0 0.0
    %285 = vmatpush1.msra.mxu0 0.0
    %286 = vmatprep.subr.mxu0 0.0
    %287 = vmatpush1.msra.mxu0 0.0
    %288 = vmatprep.subr.mxu0 0.0
    %289 = vmatpush1.msra.mxu0 0.0
    %290 = vmatprep.subr.mxu0 0.0
    %291 = vmatpush1.msra.mxu0 0.0
    %292 = vmatprep.subr.mxu0 0.0
    %293 = vmatpush1.msra.mxu0 0.0
    %294 = vmatprep.subr.mxu0 0.0
    %295 = vmatpush1.msra.mxu0 0.0
    %296 = vmatprep.subr.mxu0 0.0
    %297 = vmatpush1.msra.mxu0 0.0
    %298 = vmatprep.mubr.f32.mxu0 0.0
    %299 = vmatmul.mubr.f32.gmra.mrb[0].mxu0 %v232
    %v300 = vpop.f32.mrb[0].mxu0
    %v301 = vadd.f32 %v228, %v300
    %v302 = vpop.f32.mrb[0].mxu0
    %303 = vdwg.mxu0
    %v304 = vmax.f32 %v301, 0.0
    %v305 = vld [vmem:[%s7] sm:$0xff]
    %v306 = vld [vmem:[%s7 + $0x8] sm:$0xff]
    %v307 = vld [vmem:[%s7 + $0x10] sm:$0xff]
    %v308 = vld [vmem:[%s7 + $0x18] sm:$0xff]
    %v309 = vld [vmem:[%s8] sm:$0x1]
    %v311 = vlaneseq
    %v312 = vshrl.u32 %v311, 7
    %v313 = vsub.s32 0, %v312
    %v314 = vrot.slane %v309, %v313
    %v317 = vsel %vm230, %v304, 0
    %319 = vmatprep.subr.mxu0 0.0
    %320 = vmatpush1.msra.mxu0 %v305
    %321 = vmatprep.subr.mxu0 0.0
    %322 = vmatpush1.msra.mxu0 %v306
    %323 = vmatprep.subr.mxu0 0.0
    %324 = vmatpush1.msra.mxu0 %v307
    %325 = vmatprep.subr.mxu0 0.0
    %326 = vmatpush1.msra.mxu0 %v308
    %327 = vmatprep.subr.mxu0 0.0
    %328 = vmatpush1.msra.mxu0 0.0
    %329 = vmatprep.subr.mxu0 0.0
    %330 = vmatpush1.msra.mxu0 0.0
    %331 = vmatprep.subr.mxu0 0.0
    %332 = vmatpush1.msra.mxu0 0.0
    %333 = vmatprep.subr.mxu0 0.0
    %334 = vmatpush1.msra.mxu0 0.0
    %335 = vmatprep.subr.mxu0 0.0
    %336 = vmatpush1.msra.mxu0 0.0
    %337 = vmatprep.subr.mxu0 0.0
    %338 = vmatpush1.msra.mxu0 0.0
    %339 = vmatprep.subr.mxu0 0.0
    %340 = vmatpush1.msra.mxu0 0.0
    %341 = vmatprep.subr.mxu0 0.0
    %342 = vmatpush1.msra.mxu0 0.0
    %343 = vmatprep.subr.mxu0 0.0
    %344 = vmatpush1.msra.mxu0 0.0
    %345 = vmatprep.subr.mxu0 0.0
    %346 = vmatpush1.msra.mxu0 0.0
    %347 = vmatprep.subr.mxu0 0.0
    %348 = vmatpush1.msra.mxu0 0.0
    %349 = vmatprep.subr.mxu0 0.0
    %350 = vmatpush1.msra.mxu0 0.0
    %351 = vmatprep.subr.mxu0 0.0
    %352 = vmatpush1.msra.mxu0 0.0
    %353 = vmatprep.subr.mxu0 0.0
    %354 = vmatpush1.msra.mxu0 0.0
    %355 = vmatprep.subr.mxu0 0.0
    %356 = vmatpush1.msra.mxu0 0.0
    %357 = vmatprep.subr.mxu0 0.0
    %358 = vmatpush1.msra.mxu0 0.0
    %359 = vmatprep.subr.mxu0 0.0
    %360 = vmatpush1.msra.mxu0 0.0
    %361 = vmatprep.subr.mxu0 0.0
    %362 = vmatpush1.msra.mxu0 0.0
    %363 = vmatprep.subr.mxu0 0.0
    %364 = vmatpush1.msra.mxu0 0.0
    %365 = vmatprep.subr.mxu0 0.0
    %366 = vmatpush1.msra.mxu0 0.0
    %367 = vmatprep.subr.mxu0 0.0
    %368 = vmatpush1.msra.mxu0 0.0
    %369 = vmatprep.subr.mxu0 0.0
    %370 = vmatpush1.msra.mxu0 0.0
    %371 = vmatprep.subr.mxu0 0.0
    %372 = vmatpush1.msra.mxu0 0.0
    %373 = vmatprep.subr.mxu0 0.0
    %374 = vmatpush1.msra.mxu0 0.0
    %375 = vmatprep.subr.mxu0 0.0
    %376 = vmatpush1.msra.mxu0 0.0
    %377 = vmatprep.subr.mxu0 0.0
    %378 = vmatpush1.msra.mxu0 0.0
    %379 = vmatprep.subr.mxu0 0.0
    %380 = vmatpush1.msra.mxu0 0.0
    %381 = vmatprep.subr.mxu0 0.0
    %382 = vmatpush1.msra.mxu0 0.0
    %383 = vmatprep.mubr.f32.mxu0 0.0
    %384 = vmatmul.mubr.f32.gmra.mrb[0].mxu0 %v317
    %v385 = vpop.f32.mrb[0].mxu0
    %v386 = vadd.f32 %v314, %v385
    %v387 = vpop.f32.mrb[0].mxu0
    %388 = vdwg.mxu0
    %v389 = vsub.f32 %v58, %v386
    %v390 = vmul.f32 %v389, %v389
    %v391 = vmul.f32 %v390, -3.1415927
    %v392 = vadd.f32 %v391, 0.0
    %393 = vst.msk [vmem:[#allocation7] sm:$0xff] %vm62, %v392
    // Predicated region
    $region46: #{tpu_custom_call.1} parent=1 // pred_check
      _
    $region47: #{tpu_custom_call.1} parent=1 // pred_check_branch
      %395 = sbr.rel (0) target = $region49
    $region48: #{tpu_custom_call.1} parent=1 // pred_region
      %s397 = ssub.s32 128, 128
      %398 = vsyncadd [#allocation4], %s397
      %s400 = sshll.u32 [#allocation7], 4
      %s401 = int_to_ptr.vmem [resolvable:$true] %s400
      %403 = dma.vmem_to_hbm [thread:$0]  %s401, 128, %s9, [#allocation4]
    $region49: #{tpu_custom_call.1} parent=1 // pred_fallthru
      _
    // Predicated region
    $region50: #{tpu_custom_call.1} parent=1 // pred_check
      _
    $region51: #{tpu_custom_call.1} parent=1 // pred_check_branch
      %405 = sbr.rel (0) target = $region53
    $region52: #{tpu_custom_call.1} parent=1 // pred_region
      %406 = dma.done [#allocation4], 128
    $region53: #{tpu_custom_call.1} parent=1 // pred_fallthru
      _
    %407 = vsyncpa [#allocation3], 1
    %408 = vsyncpa [#allocation6], 1
    %409 = vsyncpa [#allocation4], 1

</llo_original>
